<compile_context>
chip_gen: v7x
topology: tpu7x:2x2x1
jax: 0.10.0
libtpu: 0.0.40
codegen_flags: <defaults>
</compile_context>

<pallas_src>
import functools

import jax
import jax.numpy as jnp
from jax.experimental import pallas as pl
from jax.experimental.pallas import tpu as pltpu

LEAKY_RELU_SLOPE = 0.3  # DelightfulTTS default
LN_EPS = 1e-5           # nn.LayerNorm default


def _round_up(x, m):
    return (x + m - 1) // m * m


def _vmem_capacity_bytes():
    try:
        return int(pltpu.get_tpu_info().vmem_capacity_bytes)
    except Exception:  # pragma: no cover - conservative fallback
        return 128 * 1024 * 1024


def _vmem_estimate_bytes(tile_t, halo, d, h, k, x_bytes, out_bytes):
    """Rough per-core VMEM footprint of one pipelined grid step."""
    tw = tile_t + 2 * halo
    weights = 2 * (k * d * h + h * d)          # SINGLE-buffered bf16 w1 + w2
    vectors = 4 * (2 * d + h + d)              # gamma/beta/b1/b2 (f32, single)
    io = (2 * x_bytes * d * tw                 # double-buffered x views
          + 2 * out_bytes * d * tile_t)        # double-buffered output tile
    live = (4 * tw * d * 2                     # f32 window + rolled temp
            + 2 * tile_t * d                   # bf16 tap operand
            + 4 * tile_t * h                   # f32 accumulator
            + 2 * tile_t * h                   # bf16 hidden
            + 4 * tile_t * d)                  # f32 conv2 result
    return weights + vectors + io + live


def _pick_tile_t(seq_len, d, h, k, halo, x_bytes, out_bytes,
                 budget_bytes, cap_rows):
    """Largest tile (multiple of `halo`, <= cap_rows) fitting the budget."""
    cap = min(max(_round_up(seq_len, halo), halo), cap_rows)
    best = halo
    cand = halo
    while cand <= cap:
        if _vmem_estimate_bytes(cand, halo, d, h, k,
                                x_bytes, out_bytes) <= budget_bytes:
            best = cand
        cand += halo
    return best


def _ff_kernel(x_left_ref, x_main_ref, x_right_ref, gamma_ref, beta_ref,
               w1_ref, b1_ref, w2_ref, b2_ref, o_ref, *,
               kernel_size, pad, tile_t, halo, seq_len, leaky_slope):
    t = pl.program_id(1)
    tw = tile_t + 2 * halo                   # window rows (multiple of 8)

    gamma = gamma_ref[...]
    beta = beta_ref[...]

    def _ln_masked(part_ref, start_row):
        """LayerNorm (f32 stats) + zero-mask rows outside [0, seq_len)."""
        xp = part_ref[...].astype(jnp.float32)
        mean = jnp.mean(xp, axis=-1, keepdims=True)
        var = jnp.mean(jnp.square(xp - mean), axis=-1, keepdims=True)
        xn = (xp - mean) * jax.lax.rsqrt(var + LN_EPS)
        xn = xn * gamma + beta
        rows = start_row + jax.lax.broadcasted_iota(
            jnp.int32, (xp.shape[0], 1), 0)
        valid = jnp.logical_and(rows >= 0, rows < seq_len)
        # Rows before the sequence start / past its end become the Conv1d
        # zero padding (clamped halo blocks / partial tiles carry garbage
        # there, which this mask discards).
        return jnp.where(valid, xn, 0.0)

    # Window local row w  <->  global time row (t*tile_t - halo + w).
    left = _ln_masked(x_left_ref, t * tile_t - halo)
    main = _ln_masked(x_main_ref, t * tile_t)
    right = _ln_masked(x_right_ref, (t + 1) * tile_t)
    window = jnp.concatenate([left, main, right], axis=0)   # (tw, D) f32

    # ---- Conv1d(D -> H, k, padding=k//2): one MXU matmul per tap ----
    # Output row r (global t*tile_t + r) for tap j needs window row r + c,
    # c = halo + j - pad.  Operands are sliced to tile_t rows BEFORE the dot
    # so halo rows never ride through the MXU; accumulator is (tile_t, H).
    acc = None
    for j in range(kernel_size):
        c = halo + j - pad
        if c == halo:
            xj = window[halo:halo + tile_t, :]          # aligned static slice
        else:
            # row i <- window[(i + c) % tw]; wrap rows land past tile_t and
            # are discarded by the aligned [:tile_t] slice (halo >= 2*pad).
            xj = pltpu.roll(window, tw - c, 0)[:tile_t, :]
        tap = jnp.dot(xj.astype(jnp.bfloat16), w1_ref[j],
                      preferred_element_type=jnp.float32)
        acc = tap if acc is None else acc + tap

    h = acc + b1_ref[...]                                # bias added once

    # ---- LeakyReLU (dropout = identity in eval mode) ----
    h = jnp.where(h >= 0.0, h, leaky_slope * h)

    # ---- Conv1d(H -> D, kernel_size=1) == matmul, + bias, * 0.5 ----
    y = jnp.dot(h.astype(jnp.bfloat16), w2_ref[...],
                preferred_element_type=jnp.float32)
    o_ref[...] = (0.5 * (y + b2_ref[...])).astype(o_ref.dtype)


def feed_forward(x, gamma, beta, w1, b1, w2, b2, *, kernel_size,
                 leaky_relu_slope=LEAKY_RELU_SLOPE, tile_t=None):
    """x: (B, T, D). w1: (K, D, H) = conv_1.weight[:, :, k].T, w2: (H, D)."""
    B, T, D = x.shape
    K, D_in, H = w1.shape
    assert K == kernel_size and D_in == D
    assert kernel_size % 2 == 1, (
        "padding=kernel_size//2 only preserves length for odd kernel_size")
    pad = kernel_size // 2
    halo = max(8, _round_up(2 * pad, 8))     # 8-aligned halo rows (>= 2*pad)

    cap_bytes = _vmem_capacity_bytes()       # 128 MiB v5e/v6e, 64 MiB v7x (/TC)
    cap_rows = 1024 if cap_bytes >= (96 << 20) else 512
    budget = (cap_bytes * 3) // 4            # estimate already counts buffers
    if tile_t is None:
        tile_t = _pick_tile_t(T, D, H, K, halo, x.dtype.itemsize,
                              x.dtype.itemsize, budget, cap_rows)
        # Guarantee >= 2 grid steps so v7x's second TensorCore gets work
        # (B == 1, short T is the common TTS inference shape).
        if B == 1 and tile_t >= T and T > halo:
            tile_t = min(tile_t, _round_up(-(-T // 2), halo))
    assert tile_t % halo == 0 and tile_t >= halo
    t_tiles = -(-T // tile_t)
    halo_stride = tile_t // halo             # halo blocks per tile
    last_halo_block = (T - 1) // halo        # last halo block with in-bounds origin

    est = _vmem_estimate_bytes(tile_t, halo, D, H, K, x.dtype.itemsize,
                               x.dtype.itemsize)
    vmem_limit = int(min(cap_bytes, max(est * 3 // 2 + (4 << 20), 32 << 20)))

    # bf16 weights: MXU-native and half the resident VMEM footprint.
    w1_bf = w1.astype(jnp.bfloat16)
    w2_bf = w2.astype(jnp.bfloat16)
    gamma32 = gamma.astype(jnp.float32)
    beta32 = beta.astype(jnp.float32)
    b1_32 = b1.astype(jnp.float32)
    b2_32 = b2.astype(jnp.float32)

    kernel = functools.partial(
        _ff_kernel, kernel_size=kernel_size, pad=pad, tile_t=tile_t,
        halo=halo, seq_len=T, leaky_slope=leaky_relu_slope)

    # Grid-invariant operands: single VMEM buffer (no pointless double-buffer).
    const_spec = functools.partial(pl.BlockSpec, pipeline_mode=pl.Buffered(1))

    return pl.pallas_call(
        kernel,
        out_shape=jax.ShapeDtypeStruct((B, T, D), x.dtype),
        grid_spec=pltpu.PrefetchScalarGridSpec(
            num_scalar_prefetch=0,
            grid=(B, t_tiles),
            in_specs=[
                # left halo: rows [t*tile_t - halo, t*tile_t); clamped to
                # block 0 for t == 0 (those rows are masked in-kernel).
                pl.BlockSpec((None, halo, D),
                             lambda b, t: (b, jnp.maximum(t * halo_stride - 1, 0), 0)),
                # main tile: rows [t*tile_t, (t+1)*tile_t)
                pl.BlockSpec((None, tile_t, D), lambda b, t: (b, t, 0)),
                # right halo: rows [(t+1)*tile_t, (t+1)*tile_t + halo);
                # clamped at the last in-bounds halo block (masked in-kernel).
                pl.BlockSpec((None, halo, D),
                             lambda b, t: (b, jnp.minimum((t + 1) * halo_stride,
                                                          last_halo_block), 0)),
                const_spec((1, D), lambda b, t: (0, 0)),        # gamma
                const_spec((1, D), lambda b, t: (0, 0)),        # beta
                const_spec((K, D, H), lambda b, t: (0, 0, 0)),  # conv1 weight
                const_spec((1, H), lambda b, t: (0, 0)),        # conv1 bias
                const_spec((H, D), lambda b, t: (0, 0)),        # conv2 weight
                const_spec((1, D), lambda b, t: (0, 0)),        # conv2 bias
            ],
            out_specs=pl.BlockSpec((None, tile_t, D), lambda b, t: (b, t, 0)),
        ),
        compiler_params=pltpu.CompilerParams(
            dimension_semantics=("parallel", "parallel"),
            vmem_limit_bytes=vmem_limit),
    )(x, x, x, gamma32, beta32, w1_bf, b1_32, w2_bf, b2_32)


def _reference(x, gamma, beta, w1, b1, w2, b2, kernel_size,
               leaky_relu_slope=LEAKY_RELU_SLOPE):
    """Pure-JAX f32 reference (mirrors the PyTorch module)."""
    x = x.astype(jnp.float32)
    mean = jnp.mean(x, axis=-1, keepdims=True)
    var = jnp.mean((x - mean) ** 2, axis=-1, keepdims=True)
    xn = (x - mean) / jnp.sqrt(var + LN_EPS) * gamma[0] + beta[0]
    pad = kernel_size // 2
    xp = jnp.pad(xn, ((0, 0), (pad, pad), (0, 0)))
    T = x.shape[1]
    h = b1[0]
    for j in range(kernel_size):
        h = h + jnp.einsum("btd,dh->bth", xp[:, j:j + T, :], w1[j])
    h = jnp.where(h >= 0, h, leaky_relu_slope * h)
    y = jnp.einsum("bth,hd->btd", h, w2) + b2[0]
    return 0.5 * y


if __name__ == "__main__":
    def _run_case(B, T, D, K, expansion, tile_t=None):
        H = expansion * D
        key = jax.random.fold_in(jax.random.PRNGKey(0), T * 131 + K)
        kx, kw1, kb1, kw2, kb2, kg, kb = jax.random.split(key, 7)

        x = jax.random.normal(kx, (B, T, D), dtype=jnp.float32)
        gamma = 1.0 + 0.1 * jax.random.normal(kg, (1, D), dtype=jnp.float32)
        beta = 0.1 * jax.random.normal(kb, (1, D), dtype=jnp.float32)
        w1 = 0.1 * jax.random.normal(kw1, (K, D, H), dtype=jnp.float32)
        b1 = 0.1 * jax.random.normal(kb1, (1, H), dtype=jnp.float32)
        w2 = 0.1 * jax.random.normal(kw2, (H, D), dtype=jnp.float32)
        b2 = 0.1 * jax.random.normal(kb2, (1, D), dtype=jnp.float32)

        out = feed_forward(x, gamma, beta, w1, b1, w2, b2,
                           kernel_size=K, tile_t=tile_t)
        out = jax.block_until_ready(out)
        ref = _reference(x, gamma, beta, w1, b1, w2, b2, K)
        assert out.shape == (B, T, D)
        # bf16 matmul operands (f32 accumulate) vs an all-f32 reference.
        assert jnp.allclose(out, ref, atol=3e-2, rtol=3e-2), \
            "mismatch vs reference"

    # Small config implied by the module (d_model=16, kernel_size=3, exp=4).
    _run_case(B=2, T=8, D=16, K=3, expansion=4)
    # Multi-tile + partial last tile: exercises cross-tile halos, clamped
    # right-halo blocks and the masked partial output block.
    _run_case(B=2, T=40, D=16, K=3, expansion=4, tile_t=16)
    # B == 1 auto-split into >= 2 tiles (v7x path) + kernel_size=5 taps.
    _run_case(B=1, T=24, D=16, K=5, expansion=4)

    print("KERNEL_OK")
</pallas_src>

<mosaic_0001>
module attributes {stable_mosaic.version = 11 : i64} {
  func.func @_ff_kernel(%arg0: i32, %arg1: i32, %arg2: memref<1x8x16xf32, #tpu.memory_space<vmem>>, %arg3: memref<1x8x16xf32, #tpu.memory_space<vmem>>, %arg4: memref<1x8x16xf32, #tpu.memory_space<vmem>>, %arg5: memref<1x16xf32, #tpu.memory_space<vmem>>, %arg6: memref<1x16xf32, #tpu.memory_space<vmem>>, %arg7: memref<3x16x64xbf16, #tpu.memory_space<vmem>>, %arg8: memref<1x64xf32, #tpu.memory_space<vmem>>, %arg9: memref<64x16xbf16, #tpu.memory_space<vmem>>, %arg10: memref<1x16xf32, #tpu.memory_space<vmem>>, %arg11: memref<1x8x16xf32, #tpu.memory_space<vmem>>) attributes {dimension_semantics = [#tpu.dimension_semantics<parallel>, #tpu.dimension_semantics<parallel>], iteration_bounds = array<i64: 2, 1>, scalar_prefetch = 0 : i64, scratch_operands = 0 : i64, tpu.core_type = #tpu.core_type<tc>, window_params = [{transform_indices = @transform_0, window_bounds = array<i64: 1, 8, 16>}, {transform_indices = @transform_1, window_bounds = array<i64: 1, 8, 16>}, {transform_indices = @transform_2, window_bounds = array<i64: 1, 8, 16>}, {pipeline_mode = #tpu.pipeline_mode<synchronous>, transform_indices = @transform_3, window_bounds = array<i64: 1, 16>}, {pipeline_mode = #tpu.pipeline_mode<synchronous>, transform_indices = @transform_4, window_bounds = array<i64: 1, 16>}, {pipeline_mode = #tpu.pipeline_mode<synchronous>, transform_indices = @transform_5, window_bounds = array<i64: 3, 16, 64>}, {pipeline_mode = #tpu.pipeline_mode<synchronous>, transform_indices = @transform_6, window_bounds = array<i64: 1, 64>}, {pipeline_mode = #tpu.pipeline_mode<synchronous>, transform_indices = @transform_7, window_bounds = array<i64: 64, 16>}, {pipeline_mode = #tpu.pipeline_mode<synchronous>, transform_indices = @transform_8, window_bounds = array<i64: 1, 16>}, {transform_indices = @transform_9, window_bounds = array<i64: 1, 8, 16>}]} {
    %c0 = arith.constant 0 : index
    %c0_0 = arith.constant 0 : index
    %0 = vector.load %arg5[%c0, %c0_0] : memref<1x16xf32, #tpu.memory_space<vmem>>, vector<1x16xf32>
    %c0_1 = arith.constant 0 : index
    %c0_2 = arith.constant 0 : index
    %1 = vector.load %arg6[%c0_1, %c0_2] : memref<1x16xf32, #tpu.memory_space<vmem>>, vector<1x16xf32>
    %c8_i32 = arith.constant 8 : i32
    %2 = arith.muli %arg1, %c8_i32 : i32
    %c8_i32_3 = arith.constant 8 : i32
    %3 = arith.subi %2, %c8_i32_3 : i32
    %c0_4 = arith.constant 0 : index
    %c0_5 = arith.constant 0 : index
    %c0_6 = arith.constant 0 : index
    %4 = vector.load %arg2[%c0_4, %c0_5, %c0_6] : memref<1x8x16xf32, #tpu.memory_space<vmem>>, vector<1x8x16xf32>
    %5 = vector.shape_cast %4 : vector<1x8x16xf32> to vector<8x16xf32>
    %cst = arith.constant dense<0.000000e+00> : vector<8xf32>
    %6 = vector.multi_reduction <add>, %5, %cst [1] : vector<8x16xf32> to vector<8xf32>
    %7 = vector.shape_cast %6 : vector<8xf32> to vector<8x1xf32>
    %cst_7 = arith.constant 1.600000e+01 : f32
    %8 = vector.broadcast %cst_7 : f32 to vector<8x1xf32>
    %9 = arith.divf %7, %8 : vector<8x1xf32>
    %10 = vector.broadcast %9 : vector<8x1xf32> to vector<8x16xf32>
    %11 = arith.subf %5, %10 : vector<8x16xf32>
    %12 = arith.mulf %11, %11 : vector<8x16xf32>
    %cst_8 = arith.constant dense<0.000000e+00> : vector<8xf32>
    %13 = vector.multi_reduction <add>, %12, %cst_8 [1] : vector<8x16xf32> to vector<8xf32>
    %14 = vector.shape_cast %13 : vector<8xf32> to vector<8x1xf32>
    %cst_9 = arith.constant 1.600000e+01 : f32
    %15 = vector.broadcast %cst_9 : f32 to vector<8x1xf32>
    %16 = arith.divf %14, %15 : vector<8x1xf32>
    %17 = vector.broadcast %9 : vector<8x1xf32> to vector<8x16xf32>
    %18 = arith.subf %5, %17 : vector<8x16xf32>
    %cst_10 = arith.constant 9.99999974E-6 : f32
    %19 = vector.broadcast %cst_10 : f32 to vector<8x1xf32>
    %20 = arith.addf %16, %19 : vector<8x1xf32>
    %21 = math.rsqrt %20 : vector<8x1xf32>
    %22 = vector.broadcast %21 : vector<8x1xf32> to vector<8x16xf32>
    %23 = arith.mulf %18, %22 : vector<8x16xf32>
    %24 = vector.broadcast %0 : vector<1x16xf32> to vector<8x16xf32>
    %25 = arith.mulf %23, %24 : vector<8x16xf32>
    %26 = vector.broadcast %1 : vector<1x16xf32> to vector<8x16xf32>
    %27 = arith.addf %25, %26 : vector<8x16xf32>
    %28 = tpu.iota {dimensions = array<i32: 0>} : vector<8x1xi32>
    %29 = vector.broadcast %3 : i32 to vector<8x1xi32>
    %30 = arith.addi %29, %28 : vector<8x1xi32>
    %c0_i32 = arith.constant 0 : i32
    %31 = vector.broadcast %c0_i32 : i32 to vector<8x1xi32>
    %32 = arith.cmpi sge, %30, %31 : vector<8x1xi32>
    %c8_i32_11 = arith.constant 8 : i32
    %33 = vector.broadcast %c8_i32_11 : i32 to vector<8x1xi32>
    %34 = arith.cmpi slt, %30, %33 : vector<8x1xi32>
    %35 = arith.andi %32, %34 : vector<8x1xi1>
    %cst_12 = arith.constant 0.000000e+00 : f32
    %36 = vector.shape_cast %35 : vector<8x1xi1> to vector<8x1xi1>
    %37 = vector.broadcast %36 : vector<8x1xi1> to vector<8x16xi1>
    %38 = vector.broadcast %cst_12 : f32 to vector<8x16xf32>
    %39 = arith.select %37, %27, %38 : vector<8x16xi1>, vector<8x16xf32>
    %c8_i32_13 = arith.constant 8 : i32
    %40 = arith.muli %arg1, %c8_i32_13 : i32
    %c0_14 = arith.constant 0 : index
    %c0_15 = arith.constant 0 : index
    %c0_16 = arith.constant 0 : index
    %41 = vector.load %arg3[%c0_14, %c0_15, %c0_16] : memref<1x8x16xf32, #tpu.memory_space<vmem>>, vector<1x8x16xf32>
    %42 = vector.shape_cast %41 : vector<1x8x16xf32> to vector<8x16xf32>
    %cst_17 = arith.constant dense<0.000000e+00> : vector<8xf32>
    %43 = vector.multi_reduction <add>, %42, %cst_17 [1] : vector<8x16xf32> to vector<8xf32>
    %44 = vector.shape_cast %43 : vector<8xf32> to vector<8x1xf32>
    %cst_18 = arith.constant 1.600000e+01 : f32
    %45 = vector.broadcast %cst_18 : f32 to vector<8x1xf32>
    %46 = arith.divf %44, %45 : vector<8x1xf32>
    %47 = vector.broadcast %46 : vector<8x1xf32> to vector<8x16xf32>
    %48 = arith.subf %42, %47 : vector<8x16xf32>
    %49 = arith.mulf %48, %48 : vector<8x16xf32>
    %cst_19 = arith.constant dense<0.000000e+00> : vector<8xf32>
    %50 = vector.multi_reduction <add>, %49, %cst_19 [1] : vector<8x16xf32> to vector<8xf32>
    %51 = vector.shape_cast %50 : vector<8xf32> to vector<8x1xf32>
    %cst_20 = arith.constant 1.600000e+01 : f32
    %52 = vector.broadcast %cst_20 : f32 to vector<8x1xf32>
    %53 = arith.divf %51, %52 : vector<8x1xf32>
    %54 = vector.broadcast %46 : vector<8x1xf32> to vector<8x16xf32>
    %55 = arith.subf %42, %54 : vector<8x16xf32>
    %cst_21 = arith.constant 9.99999974E-6 : f32
    %56 = vector.broadcast %cst_21 : f32 to vector<8x1xf32>
    %57 = arith.addf %53, %56 : vector<8x1xf32>
    %58 = math.rsqrt %57 : vector<8x1xf32>
    %59 = vector.broadcast %58 : vector<8x1xf32> to vector<8x16xf32>
    %60 = arith.mulf %55, %59 : vector<8x16xf32>
    %61 = vector.broadcast %0 : vector<1x16xf32> to vector<8x16xf32>
    %62 = arith.mulf %60, %61 : vector<8x16xf32>
    %63 = vector.broadcast %1 : vector<1x16xf32> to vector<8x16xf32>
    %64 = arith.addf %62, %63 : vector<8x16xf32>
    %65 = tpu.iota {dimensions = array<i32: 0>} : vector<8x1xi32>
    %66 = vector.broadcast %40 : i32 to vector<8x1xi32>
    %67 = arith.addi %66, %65 : vector<8x1xi32>
    %c0_i32_22 = arith.constant 0 : i32
    %68 = vector.broadcast %c0_i32_22 : i32 to vector<8x1xi32>
    %69 = arith.cmpi sge, %67, %68 : vector<8x1xi32>
    %c8_i32_23 = arith.constant 8 : i32
    %70 = vector.broadcast %c8_i32_23 : i32 to vector<8x1xi32>
    %71 = arith.cmpi slt, %67, %70 : vector<8x1xi32>
    %72 = arith.andi %69, %71 : vector<8x1xi1>
    %cst_24 = arith.constant 0.000000e+00 : f32
    %73 = vector.shape_cast %72 : vector<8x1xi1> to vector<8x1xi1>
    %74 = vector.broadcast %73 : vector<8x1xi1> to vector<8x16xi1>
    %75 = vector.broadcast %cst_24 : f32 to vector<8x16xf32>
    %76 = arith.select %74, %64, %75 : vector<8x16xi1>, vector<8x16xf32>
    %c1_i32 = arith.constant 1 : i32
    %77 = arith.addi %arg1, %c1_i32 : i32
    %c8_i32_25 = arith.constant 8 : i32
    %78 = arith.muli %77, %c8_i32_25 : i32
    %c0_26 = arith.constant 0 : index
    %c0_27 = arith.constant 0 : index
    %c0_28 = arith.constant 0 : index
    %79 = vector.load %arg4[%c0_26, %c0_27, %c0_28] : memref<1x8x16xf32, #tpu.memory_space<vmem>>, vector<1x8x16xf32>
    %80 = vector.shape_cast %79 : vector<1x8x16xf32> to vector<8x16xf32>
    %cst_29 = arith.constant dense<0.000000e+00> : vector<8xf32>
    %81 = vector.multi_reduction <add>, %80, %cst_29 [1] : vector<8x16xf32> to vector<8xf32>
    %82 = vector.shape_cast %81 : vector<8xf32> to vector<8x1xf32>
    %cst_30 = arith.constant 1.600000e+01 : f32
    %83 = vector.broadcast %cst_30 : f32 to vector<8x1xf32>
    %84 = arith.divf %82, %83 : vector<8x1xf32>
    %85 = vector.broadcast %84 : vector<8x1xf32> to vector<8x16xf32>
    %86 = arith.subf %80, %85 : vector<8x16xf32>
    %87 = arith.mulf %86, %86 : vector<8x16xf32>
    %cst_31 = arith.constant dense<0.000000e+00> : vector<8xf32>
    %88 = vector.multi_reduction <add>, %87, %cst_31 [1] : vector<8x16xf32> to vector<8xf32>
    %89 = vector.shape_cast %88 : vector<8xf32> to vector<8x1xf32>
    %cst_32 = arith.constant 1.600000e+01 : f32
    %90 = vector.broadcast %cst_32 : f32 to vector<8x1xf32>
    %91 = arith.divf %89, %90 : vector<8x1xf32>
    %92 = vector.broadcast %84 : vector<8x1xf32> to vector<8x16xf32>
    %93 = arith.subf %80, %92 : vector<8x16xf32>
    %cst_33 = arith.constant 9.99999974E-6 : f32
    %94 = vector.broadcast %cst_33 : f32 to vector<8x1xf32>
    %95 = arith.addf %91, %94 : vector<8x1xf32>
    %96 = math.rsqrt %95 : vector<8x1xf32>
    %97 = vector.broadcast %96 : vector<8x1xf32> to vector<8x16xf32>
    %98 = arith.mulf %93, %97 : vector<8x16xf32>
    %99 = vector.broadcast %0 : vector<1x16xf32> to vector<8x16xf32>
    %100 = arith.mulf %98, %99 : vector<8x16xf32>
    %101 = vector.broadcast %1 : vector<1x16xf32> to vector<8x16xf32>
    %102 = arith.addf %100, %101 : vector<8x16xf32>
    %103 = tpu.iota {dimensions = array<i32: 0>} : vector<8x1xi32>
    %104 = vector.broadcast %78 : i32 to vector<8x1xi32>
    %105 = arith.addi %104, %103 : vector<8x1xi32>
    %c0_i32_34 = arith.constant 0 : i32
    %106 = vector.broadcast %c0_i32_34 : i32 to vector<8x1xi32>
    %107 = arith.cmpi sge, %105, %106 : vector<8x1xi32>
    %c8_i32_35 = arith.constant 8 : i32
    %108 = vector.broadcast %c8_i32_35 : i32 to vector<8x1xi32>
    %109 = arith.cmpi slt, %105, %108 : vector<8x1xi32>
    %110 = arith.andi %107, %109 : vector<8x1xi1>
    %cst_36 = arith.constant 0.000000e+00 : f32
    %111 = vector.shape_cast %110 : vector<8x1xi1> to vector<8x1xi1>
    %112 = vector.broadcast %111 : vector<8x1xi1> to vector<8x16xi1>
    %113 = vector.broadcast %cst_36 : f32 to vector<8x16xf32>
    %114 = arith.select %112, %102, %113 : vector<8x16xi1>, vector<8x16xf32>
    %115 = tpu.concatenate %39, %76, %114 in 0 : vector<8x16xf32>, vector<8x16xf32>, vector<8x16xf32> -> vector<24x16xf32>
    %c17_i32 = arith.constant 17 : i32
    %116 = tpu.dynamic_rotate %115 by %c17_i32 dim 0 : vector<24x16xf32>, i32 -> vector<24x16xf32>
    %117 = vector.extract_strided_slice %116 {offsets = [0, 0], sizes = [8, 16], strides = [1, 1]} : vector<24x16xf32> to vector<8x16xf32>
    %118 = arith.truncf %117 : vector<8x16xf32> to vector<8x16xbf16>
    %c0_37 = arith.constant 0 : index
    %c0_38 = arith.constant 0 : index
    %c0_39 = arith.constant 0 : index
    %119 = vector.load %arg7[%c0_37, %c0_38, %c0_39] : memref<3x16x64xbf16, #tpu.memory_space<vmem>>, vector<1x16x64xbf16>
    %120 = vector.shape_cast %119 : vector<1x16x64xbf16> to vector<16x64xbf16>
    %cst_40 = arith.constant dense<0.000000e+00> : vector<8x64xf32>
    %121 = tpu.matmul %118, %120, %cst_40 {dimension_numbers = #tpu.dot_dimension_numbers<[1], [0], [0], [1], [0, 0, 1, 1], [], []>} : vector<8x16xbf16>, vector<16x64xbf16>, vector<8x64xf32> -> vector<8x64xf32>
    %122 = vector.extract_strided_slice %115 {offsets = [8, 0], sizes = [8, 16], strides = [1, 1]} : vector<24x16xf32> to vector<8x16xf32>
    %123 = arith.truncf %122 : vector<8x16xf32> to vector<8x16xbf16>
    %c1 = arith.constant 1 : index
    %c0_41 = arith.constant 0 : index
    %c0_42 = arith.constant 0 : index
    %124 = vector.load %arg7[%c1, %c0_41, %c0_42] : memref<3x16x64xbf16, #tpu.memory_space<vmem>>, vector<1x16x64xbf16>
    %125 = vector.shape_cast %124 : vector<1x16x64xbf16> to vector<16x64xbf16>
    %cst_43 = arith.constant dense<0.000000e+00> : vector<8x64xf32>
    %126 = tpu.matmul %123, %125, %cst_43 {dimension_numbers = #tpu.dot_dimension_numbers<[1], [0], [0], [1], [0, 0, 1, 1], [], []>} : vector<8x16xbf16>, vector<16x64xbf16>, vector<8x64xf32> -> vector<8x64xf32>
    %127 = arith.addf %121, %126 : vector<8x64xf32>
    %c15_i32 = arith.constant 15 : i32
    %128 = tpu.dynamic_rotate %115 by %c15_i32 dim 0 : vector<24x16xf32>, i32 -> vector<24x16xf32>
    %129 = vector.extract_strided_slice %128 {offsets = [0, 0], sizes = [8, 16], strides = [1, 1]} : vector<24x16xf32> to vector<8x16xf32>
    %130 = arith.truncf %129 : vector<8x16xf32> to vector<8x16xbf16>
    %c2 = arith.constant 2 : index
    %c0_44 = arith.constant 0 : index
    %c0_45 = arith.constant 0 : index
    %131 = vector.load %arg7[%c2, %c0_44, %c0_45] : memref<3x16x64xbf16, #tpu.memory_space<vmem>>, vector<1x16x64xbf16>
    %132 = vector.shape_cast %131 : vector<1x16x64xbf16> to vector<16x64xbf16>
    %cst_46 = arith.constant dense<0.000000e+00> : vector<8x64xf32>
    %133 = tpu.matmul %130, %132, %cst_46 {dimension_numbers = #tpu.dot_dimension_numbers<[1], [0], [0], [1], [0, 0, 1, 1], [], []>} : vector<8x16xbf16>, vector<16x64xbf16>, vector<8x64xf32> -> vector<8x64xf32>
    %134 = arith.addf %127, %133 : vector<8x64xf32>
    %c0_47 = arith.constant 0 : index
    %c0_48 = arith.constant 0 : index
    %135 = vector.load %arg8[%c0_47, %c0_48] : memref<1x64xf32, #tpu.memory_space<vmem>>, vector<1x64xf32>
    %136 = vector.broadcast %135 : vector<1x64xf32> to vector<8x64xf32>
    %137 = arith.addf %134, %136 : vector<8x64xf32>
    %cst_49 = arith.constant 0.000000e+00 : f32
    %138 = vector.broadcast %cst_49 : f32 to vector<8x64xf32>
    %139 = arith.cmpf oge, %137, %138 : vector<8x64xf32>
    %cst_50 = arith.constant 3.000000e-01 : f32
    %140 = vector.broadcast %cst_50 : f32 to vector<8x64xf32>
    %141 = arith.mulf %140, %137 : vector<8x64xf32>
    %142 = arith.select %139, %137, %141 : vector<8x64xi1>, vector<8x64xf32>
    %143 = arith.truncf %142 : vector<8x64xf32> to vector<8x64xbf16>
    %c0_51 = arith.constant 0 : index
    %c0_52 = arith.constant 0 : index
    %144 = vector.load %arg9[%c0_51, %c0_52] : memref<64x16xbf16, #tpu.memory_space<vmem>>, vector<64x16xbf16>
    %cst_53 = arith.constant dense<0.000000e+00> : vector<8x16xf32>
    %145 = tpu.matmul %143, %144, %cst_53 {dimension_numbers = #tpu.dot_dimension_numbers<[1], [0], [0], [1], [0, 0, 1, 1], [], []>} : vector<8x64xbf16>, vector<64x16xbf16>, vector<8x16xf32> -> vector<8x16xf32>
    %c0_54 = arith.constant 0 : index
    %c0_55 = arith.constant 0 : index
    %146 = vector.load %arg10[%c0_54, %c0_55] : memref<1x16xf32, #tpu.memory_space<vmem>>, vector<1x16xf32>
    %147 = vector.broadcast %146 : vector<1x16xf32> to vector<8x16xf32>
    %148 = arith.addf %145, %147 : vector<8x16xf32>
    %cst_56 = arith.constant 5.000000e-01 : f32
    %149 = vector.broadcast %cst_56 : f32 to vector<8x16xf32>
    %150 = arith.mulf %149, %148 : vector<8x16xf32>
    %c0_57 = arith.constant 0 : index
    %c0_58 = arith.constant 0 : index
    %c0_59 = arith.constant 0 : index
    %151 = vector.load %arg11[%c0_57, %c0_58, %c0_59] : memref<1x8x16xf32, #tpu.memory_space<vmem>>, vector<1x8x16xf32>
    %152 = vector.shape_cast %151 : vector<1x8x16xf32> to vector<8x16xf32>
    %153 = vector.shape_cast %150 : vector<8x16xf32> to vector<1x8x16xf32>
    tpu.vector_store %arg11[%c0_57, %c0_58, %c0_59], %153 {strides = array<i32>} : memref<1x8x16xf32, #tpu.memory_space<vmem>>, vector<1x8x16xf32>,
    return
  }
  func.func @transform_0(%arg0: i32, %arg1: i32) -> (i32, i32, i32) {
    %c1_i32 = arith.constant 1 : i32
    %0 = arith.muli %arg1, %c1_i32 : i32
    %c1_i32_0 = arith.constant 1 : i32
    %1 = arith.subi %0, %c1_i32_0 : i32
    %c0_i32 = arith.constant 0 : i32
    %2 = arith.maxsi %1, %c0_i32 : i32
    %c0_i32_1 = arith.constant 0 : i32
    %c0_i32_2 = arith.constant 0 : i32
    return %arg0, %2, %c0_i32_1 : i32, i32, i32
  }
  func.func @transform_1(%arg0: i32, %arg1: i32) -> (i32, i32, i32) {
    %c0_i32 = arith.constant 0 : i32
    %c0_i32_0 = arith.constant 0 : i32
    return %arg0, %arg1, %c0_i32 : i32, i32, i32
  }
  func.func @transform_2(%arg0: i32, %arg1: i32) -> (i32, i32, i32) {
    %c1_i32 = arith.constant 1 : i32
    %0 = arith.addi %arg1, %c1_i32 : i32
    %c1_i32_0 = arith.constant 1 : i32
    %1 = arith.muli %0, %c1_i32_0 : i32
    %c0_i32 = arith.constant 0 : i32
    %2 = arith.minsi %1, %c0_i32 : i32
    %c0_i32_1 = arith.constant 0 : i32
    %c0_i32_2 = arith.constant 0 : i32
    return %arg0, %2, %c0_i32_1 : i32, i32, i32
  }
  func.func @transform_3(%arg0: i32, %arg1: i32) -> (i32, i32) {
    %c0_i32 = arith.constant 0 : i32
    %c0_i32_0 = arith.constant 0 : i32
    %c0_i32_1 = arith.constant 0 : i32
    return %c0_i32, %c0_i32_0 : i32, i32
  }
  func.func @transform_4(%arg0: i32, %arg1: i32) -> (i32, i32) {
    %c0_i32 = arith.constant 0 : i32
    %c0_i32_0 = arith.constant 0 : i32
    %c0_i32_1 = arith.constant 0 : i32
    return %c0_i32, %c0_i32_0 : i32, i32
  }
  func.func @transform_5(%arg0: i32, %arg1: i32) -> (i32, i32, i32) {
    %c0_i32 = arith.constant 0 : i32
    %c0_i32_0 = arith.constant 0 : i32
    %c0_i32_1 = arith.constant 0 : i32
    %c0_i32_2 = arith.constant 0 : i32
    return %c0_i32, %c0_i32_0, %c0_i32_1 : i32, i32, i32
  }
  func.func @transform_6(%arg0: i32, %arg1: i32) -> (i32, i32) {
    %c0_i32 = arith.constant 0 : i32
    %c0_i32_0 = arith.constant 0 : i32
    %c0_i32_1 = arith.constant 0 : i32
    return %c0_i32, %c0_i32_0 : i32, i32
  }
  func.func @transform_7(%arg0: i32, %arg1: i32) -> (i32, i32) {
    %c0_i32 = arith.constant 0 : i32
    %c0_i32_0 = arith.constant 0 : i32
    %c0_i32_1 = arith.constant 0 : i32
    return %c0_i32, %c0_i32_0 : i32, i32
  }
  func.func @transform_8(%arg0: i32, %arg1: i32) -> (i32, i32) {
    %c0_i32 = arith.constant 0 : i32
    %c0_i32_0 = arith.constant 0 : i32
    %c0_i32_1 = arith.constant 0 : i32
    return %c0_i32, %c0_i32_0 : i32, i32
  }
  func.func @transform_9(%arg0: i32, %arg1: i32) -> (i32, i32, i32) {
    %c0_i32 = arith.constant 0 : i32
    %c0_i32_0 = arith.constant 0 : i32
    return %arg0, %arg1, %c0_i32 : i32, i32, i32
  }
}

</mosaic_0001>

<llo_original>
// kernel: tpu_custom_call.1
$region0: #{tpu_custom_call.1}
  #allocation0 [shape = 'u32[]', space=smem, size = 0x4, offset = 0x4, fixed_abs, tag = 'smem constant byte address 0x4 - core index']
  #allocation1 [shape = 'u32[144,128]{1,0:T(1,128)}', space=vmem, size = 0x12000, scoped, tag = 'internal scratch']
  %s0 = inlined_call_operand.vmem [shape: f32[2,8,16], index: 0, kind: input, shape index: {}]
  %s1 = inlined_call_operand.hbm [shape: f32[2,8,16], index: 1, kind: input, shape index: {}]
  %s2 = inlined_call_operand.hbm [shape: f32[2,8,16], index: 2, kind: input, shape index: {}]
  %s3 = inlined_call_operand.vmem [shape: f32[1,16], index: 3, kind: input, shape index: {}]
  %s4 = inlined_call_operand.vmem [shape: f32[1,16], index: 4, kind: input, shape index: {}]
  %s5 = inlined_call_operand.vmem [shape: bf16[3,16,64], index: 5, kind: input, shape index: {}]
  %s6 = inlined_call_operand.vmem [shape: f32[1,64], index: 6, kind: input, shape index: {}]
  %s7 = inlined_call_operand.vmem [shape: bf16[64,16], index: 7, kind: input, shape index: {}]
  %s8 = inlined_call_operand.vmem [shape: f32[1,16], index: 8, kind: input, shape index: {}]
  %s9 = inlined_call_operand.hbm [shape: f32[2,8,16], index: 9, kind: output, shape index: {}]
  %s10 = sld [smem:[#allocation0]]
  $region77: #{tpu_custom_call.1} parent=0
    _
  %s12 = ssub.s32 1, %s10
  %s13 = scalar_select 0, %s12, %s10
  $region1: #{tpu_custom_call.1} parent=0
    #allocation2 [shape = 'u8[8192]{0}', space=vmem, size = 0x2000, scoped, tag = 'input window, operand 1']
    #allocation3 [shape = 's32[2]{0}', space=sflag, size = 0x8, scoped, tag = 'scoped memory for tpu_custom_call.1']
    #allocation4 [shape = 's32[2]{0}', space=sflag, size = 0x8, scoped, tag = 'scoped memory for tpu_custom_call.1']
    #allocation5 [shape = 'u8[8192]{0}', space=vmem, size = 0x2000, scoped, tag = 'input window, operand 2']
    #allocation6 [shape = 's32[2]{0}', space=sflag, size = 0x8, scoped, tag = 'scoped memory for tpu_custom_call.1']
    #allocation7 [shape = 'u8[8192]{0}', space=vmem, size = 0x2000, scoped, tag = 'output window, operand 0']
    %14 = vsyncpa [#allocation3], 0
    %s15 = scalar_lea.sflag [#allocation3], 1
    %16 = vsyncpa %s15, 0
    %17 = vsyncpa [#allocation6], 0
    %s18 = scalar_lea.sflag [#allocation6], 1
    %19 = vsyncpa %s18, 0
    %20 = vsyncpa [#allocation4], 0
    %s21 = scalar_lea.sflag [#allocation4], 1
    %22 = vsyncpa %s21, 0
    loop: start=0, step=1, limit=4
    $region2: #{tpu_custom_call.1} parent=1 // loop_pre_header
      _
    $region3: #{tpu_custom_call.1} parent=1 // loop_header
      %s24 = sphi 0, %s28
      %p25 = scmp.ge.s32.totalorder %s24, 4
      %s31 = sphi 0, %s43
      %s32 = sphi 0, %s39
      %s33 = sphi 0, %s31
      %s34 = sphi 0, %s32
      %s35 = sphi 0, %s33
      %s36 = sphi 0, %s34
      %s54 = sphi 0, %s56
      %s57 = sphi 0, %s54
      %s58 = sphi 0, %s57
      %s74 = sphi 0, %s58
      %s82 = sphi 0, %s84
      %s85 = sphi 0, %s82
      %s86 = sphi 0, %s85
      %s102 = sphi 0, %s86
      %s116 = sphi 0, %s118
      %s119 = sphi 0, %s116
      %s120 = sphi 0, %s119
      %s136 = sphi 0, %s120
      %s140 = sphi 0, %s140
      %s142 = sphi 0, %s140
      %s143 = sphi 0, %s142
      %s157 = sphi 0, %s143
      %s161 = sphi 0, %s161
      %s163 = sphi 0, %s161
      %s164 = sphi 0, %s163
      %s178 = sphi 0, %s164
      %s182 = sphi 0, %s182
      %s184 = sphi 0, %s182
      %s185 = sphi 0, %s184
      %s199 = sphi 0, %s185
      %s203 = sphi 0, %s203
      %s205 = sphi 0, %s203
      %s206 = sphi 0, %s205
      %s220 = sphi 0, %s206
      %s224 = sphi 0, %s224
      %s226 = sphi 0, %s224
      %s227 = sphi 0, %s226
      %s241 = sphi 0, %s227
      %s245 = sphi 0, %s245
      %s247 = sphi 0, %s245
      %s248 = sphi 0, %s247
      %s262 = sphi 0, %s248
      %s270 = sphi 0, %s272
      %s273 = sphi 0, %s270
      %s274 = sphi 0, %s273
      %s290 = sphi 0, %s274
    $region4: #{tpu_custom_call.1} parent=1 // loop_header_branch
      %27 = sbr.rel (%p25) target = $region8
    $region5: #{tpu_custom_call.1} parent=1 // loop_body
      %s29 = ssub.s32 %s24, 1
      %s30 = ssub.s32 %s24, 2
      %s37 = sadd.s32 1, %s32
      %p38 = scmp.ge.s32.totalorder %s37, 1
      %s39 = scalar_select %p38, 0, %s37
      %s40 = sadd.s32 1, %s31
      %s41 = scalar_select %p38, %s40, %s31
      %p42 = scmp.ge.s32.totalorder %s41, 2
      %s43 = scalar_select %p42, 0, %s41
      %s44 = ssub.s32 %s32, 1
      %p45 = scmp.gt.s32.totalorder %s44, 0
      %s46 = scalar_select %p45, %s44, 0
      %s47 = ssub.s32 %s39, 1
      %p48 = scmp.gt.s32.totalorder %s47, 0
      %s49 = scalar_select %p48, %s47, 0
      %s50 = ssub.s32 %s31, %s43
      %s51 = ssub.s32 %s46, %s49
      %s52 = sor.u32 %s50, %s51
      %p53 = scmp.eq.s32.totalorder %s52, 0
      %s55 = sadd.s32 %s54, 1
      %s56 = scalar_select %p53, %s54, %s55
      %p59 = pneg %p53
      %p60 = scmp.eq.s32.totalorder %s24, 1
      %p61 = por %p59, %p60
      %p62 = scmp.ne.s32.totalorder %s54, %s57
      %p63 = scmp.eq.s32.totalorder %s24, 0
      %p64 = por %p62, %p63
      %p65 = scmp.ne.s32.totalorder %s54, %s57
      %p66 = scmp.eq.s32.totalorder %s29, 1
      %p67 = por %p65, %p66
      %p68 = scmp.ne.s32.totalorder %s57, %s58
      %p69 = scmp.eq.s32.totalorder %s29, 0
      %p70 = por %p68, %p69
      %p71 = scmp.ne.s32.totalorder %s57, %s58
      %p72 = scmp.eq.s32.totalorder %s30, 1
      %p73 = por %p71, %p72
      %p75 = scmp.ne.s32.totalorder %s58, %s74
      %p76 = scmp.eq.s32.totalorder %s30, 0
      %p77 = por %p75, %p76
      %s78 = ssub.s32 %s31, %s43
      %s79 = ssub.s32 %s32, %s39
      %s80 = sor.u32 %s78, %s79
      %p81 = scmp.eq.s32.totalorder %s80, 0
      %s83 = sadd.s32 %s82, 1
      %s84 = scalar_select %p81, %s82, %s83
      %p87 = pneg %p81
      %p88 = scmp.eq.s32.totalorder %s24, 1
      %p89 = por %p87, %p88
      %p90 = scmp.ne.s32.totalorder %s82, %s85
      %p91 = scmp.eq.s32.totalorder %s24, 0
      %p92 = por %p90, %p91
      %p93 = scmp.ne.s32.totalorder %s82, %s85
      %p94 = scmp.eq.s32.totalorder %s29, 1
      %p95 = por %p93, %p94
      %p96 = scmp.ne.s32.totalorder %s85, %s86
      %p97 = scmp.eq.s32.totalorder %s29, 0
      %p98 = por %p96, %p97
      %p99 = scmp.ne.s32.totalorder %s85, %s86
      %p100 = scmp.eq.s32.totalorder %s30, 1
      %p101 = por %p99, %p100
      %p103 = scmp.ne.s32.totalorder %s86, %s102
      %p104 = scmp.eq.s32.totalorder %s30, 0
      %p105 = por %p103, %p104
      %s106 = sadd.s32 %s32, 1
      %p107 = scmp.lt.s32.totalorder %s106, 0
      %s108 = scalar_select %p107, %s106, 0
      %s109 = sadd.s32 %s39, 1
      %p110 = scmp.lt.s32.totalorder %s109, 0
      %s111 = scalar_select %p110, %s109, 0
      %s112 = ssub.s32 %s31, %s43
      %s113 = ssub.s32 %s108, %s111
      %s114 = sor.u32 %s112, %s113
      %p115 = scmp.eq.s32.totalorder %s114, 0
      %s117 = sadd.s32 %s116, 1
      %s118 = scalar_select %p115, %s116, %s117
      %p121 = pneg %p115
      %p122 = scmp.eq.s32.totalorder %s24, 1
      %p123 = por %p121, %p122
      %p124 = scmp.ne.s32.totalorder %s116, %s119
      %p125 = scmp.eq.s32.totalorder %s24, 0
      %p126 = por %p124, %p125
      %p127 = scmp.ne.s32.totalorder %s116, %s119
      %p128 = scmp.eq.s32.totalorder %s29, 1
      %p129 = por %p127, %p128
      %p130 = scmp.ne.s32.totalorder %s119, %s120
      %p131 = scmp.eq.s32.totalorder %s29, 0
      %p132 = por %p130, %p131
      %p133 = scmp.ne.s32.totalorder %s119, %s120
      %p134 = scmp.eq.s32.totalorder %s30, 1
      %p135 = por %p133, %p134
      %p137 = scmp.ne.s32.totalorder %s120, %s136
      %p138 = scmp.eq.s32.totalorder %s30, 0
      %p139 = por %p137, %p138
      %s141 = sadd.s32 %s140, 1
      %p144 = scmp.eq.s32.totalorder %s24, 1
      %p145 = scmp.ne.s32.totalorder %s140, %s142
      %p146 = scmp.eq.s32.totalorder %s24, 0
      %p147 = por %p145, %p146
      %p148 = scmp.ne.s32.totalorder %s140, %s142
      %p149 = scmp.eq.s32.totalorder %s29, 1
      %p150 = por %p148, %p149
      %p151 = scmp.ne.s32.totalorder %s142, %s143
      %p152 = scmp.eq.s32.totalorder %s29, 0
      %p153 = por %p151, %p152
      %p154 = scmp.ne.s32.totalorder %s142, %s143
      %p155 = scmp.eq.s32.totalorder %s30, 1
      %p156 = por %p154, %p155
      %p158 = scmp.ne.s32.totalorder %s143, %s157
      %p159 = scmp.eq.s32.totalorder %s30, 0
      %p160 = por %p158, %p159
      %s162 = sadd.s32 %s161, 1
      %p165 = scmp.eq.s32.totalorder %s24, 1
      %p166 = scmp.ne.s32.totalorder %s161, %s163
      %p167 = scmp.eq.s32.totalorder %s24, 0
      %p168 = por %p166, %p167
      %p169 = scmp.ne.s32.totalorder %s161, %s163
      %p170 = scmp.eq.s32.totalorder %s29, 1
      %p171 = por %p169, %p170
      %p172 = scmp.ne.s32.totalorder %s163, %s164
      %p173 = scmp.eq.s32.totalorder %s29, 0
      %p174 = por %p172, %p173
      %p175 = scmp.ne.s32.totalorder %s163, %s164
      %p176 = scmp.eq.s32.totalorder %s30, 1
      %p177 = por %p175, %p176
      %p179 = scmp.ne.s32.totalorder %s164, %s178
      %p180 = scmp.eq.s32.totalorder %s30, 0
      %p181 = por %p179, %p180
      %s183 = sadd.s32 %s182, 1
      %p186 = scmp.eq.s32.totalorder %s24, 1
      %p187 = scmp.ne.s32.totalorder %s182, %s184
      %p188 = scmp.eq.s32.totalorder %s24, 0
      %p189 = por %p187, %p188
      %p190 = scmp.ne.s32.totalorder %s182, %s184
      %p191 = scmp.eq.s32.totalorder %s29, 1
      %p192 = por %p190, %p191
      %p193 = scmp.ne.s32.totalorder %s184, %s185
      %p194 = scmp.eq.s32.totalorder %s29, 0
      %p195 = por %p193, %p194
      %p196 = scmp.ne.s32.totalorder %s184, %s185
      %p197 = scmp.eq.s32.totalorder %s30, 1
      %p198 = por %p196, %p197
      %p200 = scmp.ne.s32.totalorder %s185, %s199
      %p201 = scmp.eq.s32.totalorder %s30, 0
      %p202 = por %p200, %p201
      %s204 = sadd.s32 %s203, 1
      %p207 = scmp.eq.s32.totalorder %s24, 1
      %p208 = scmp.ne.s32.totalorder %s203, %s205
      %p209 = scmp.eq.s32.totalorder %s24, 0
      %p210 = por %p208, %p209
      %p211 = scmp.ne.s32.totalorder %s203, %s205
      %p212 = scmp.eq.s32.totalorder %s29, 1
      %p213 = por %p211, %p212
      %p214 = scmp.ne.s32.totalorder %s205, %s206
      %p215 = scmp.eq.s32.totalorder %s29, 0
      %p216 = por %p214, %p215
      %p217 = scmp.ne.s32.totalorder %s205, %s206
      %p218 = scmp.eq.s32.totalorder %s30, 1
      %p219 = por %p217, %p218
      %p221 = scmp.ne.s32.totalorder %s206, %s220
      %p222 = scmp.eq.s32.totalorder %s30, 0
      %p223 = por %p221, %p222
      %s225 = sadd.s32 %s224, 1
      %p228 = scmp.eq.s32.totalorder %s24, 1
      %p229 = scmp.ne.s32.totalorder %s224, %s226
      %p230 = scmp.eq.s32.totalorder %s24, 0
      %p231 = por %p229, %p230
      %p232 = scmp.ne.s32.totalorder %s224, %s226
      %p233 = scmp.eq.s32.totalorder %s29, 1
      %p234 = por %p232, %p233
      %p235 = scmp.ne.s32.totalorder %s226, %s227
      %p236 = scmp.eq.s32.totalorder %s29, 0
      %p237 = por %p235, %p236
      %p238 = scmp.ne.s32.totalorder %s226, %s227
      %p239 = scmp.eq.s32.totalorder %s30, 1
      %p240 = por %p238, %p239
      %p242 = scmp.ne.s32.totalorder %s227, %s241
      %p243 = scmp.eq.s32.totalorder %s30, 0
      %p244 = por %p242, %p243
      %s246 = sadd.s32 %s245, 1
      %p249 = scmp.eq.s32.totalorder %s24, 1
      %p250 = scmp.ne.s32.totalorder %s245, %s247
      %p251 = scmp.eq.s32.totalorder %s24, 0
      %p252 = por %p250, %p251
      %p253 = scmp.ne.s32.totalorder %s245, %s247
      %p254 = scmp.eq.s32.totalorder %s29, 1
      %p255 = por %p253, %p254
      %p256 = scmp.ne.s32.totalorder %s247, %s248
      %p257 = scmp.eq.s32.totalorder %s29, 0
      %p258 = por %p256, %p257
      %p259 = scmp.ne.s32.totalorder %s247, %s248
      %p260 = scmp.eq.s32.totalorder %s30, 1
      %p261 = por %p259, %p260
      %p263 = scmp.ne.s32.totalorder %s248, %s262
      %p264 = scmp.eq.s32.totalorder %s30, 0
      %p265 = por %p263, %p264
      %s266 = ssub.s32 %s31, %s43
      %s267 = ssub.s32 %s32, %s39
      %s268 = sor.u32 %s266, %s267
      %p269 = scmp.eq.s32.totalorder %s268, 0
      %s271 = sadd.s32 %s270, 1
      %s272 = scalar_select %p269, %s270, %s271
      %p275 = pneg %p269
      %p276 = scmp.eq.s32.totalorder %s24, 1
      %p277 = por %p275, %p276
      %p278 = scmp.ne.s32.totalorder %s270, %s273
      %p279 = scmp.eq.s32.totalorder %s24, 0
      %p280 = por %p278, %p279
      %p281 = scmp.ne.s32.totalorder %s270, %s273
      %p282 = scmp.eq.s32.totalorder %s29, 1
      %p283 = por %p281, %p282
      %p284 = scmp.ne.s32.totalorder %s273, %s274
      %p285 = scmp.eq.s32.totalorder %s29, 0
      %p286 = por %p284, %p285
      %p287 = scmp.ne.s32.totalorder %s273, %s274
      %p288 = scmp.eq.s32.totalorder %s30, 1
      %p289 = por %p287, %p288
      %p291 = scmp.ne.s32.totalorder %s274, %s290
      %p292 = scmp.eq.s32.totalorder %s30, 0
      %p293 = por %p291, %p292
      %p294 = scmp.le.s32.totalorder 1, %s24
      %p295 = scmp.lt.s32.totalorder %s24, 3
      %p296 = pnand %p294, %p295
      %p297 = pneg %p296
      // Predicated region
      $region9: #{tpu_custom_call.1} parent=5 // pred_check
        _
      $region10: #{tpu_custom_call.1} parent=5 // pred_check_branch
        %299 = sbr.rel (%p296) target = $region12
      $region11: #{tpu_custom_call.1} parent=5 // pred_region
        %s300 = ssub.s32 %s24, 1
        // Predicated region
        $region13: #{tpu_custom_call.1} parent=11 // pred_check
          %p301 = pneg %p153
        $region14: #{tpu_custom_call.1} parent=11 // pred_check_branch
          %303 = sbr.rel (%p301) target = $region16
        $region15: #{tpu_custom_call.1} parent=11 // pred_region
          _
        $region16: #{tpu_custom_call.1} parent=11 // pred_fallthru
          _
        // Predicated region
        $region17: #{tpu_custom_call.1} parent=11 // pred_check
          %p304 = pneg %p174
        $region18: #{tpu_custom_call.1} parent=11 // pred_check_branch
          %306 = sbr.rel (%p304) target = $region20
        $region19: #{tpu_custom_call.1} parent=11 // pred_region
          _
        $region20: #{tpu_custom_call.1} parent=11 // pred_fallthru
          _
        // Predicated region
        $region21: #{tpu_custom_call.1} parent=11 // pred_check
          %p307 = pneg %p195
        $region22: #{tpu_custom_call.1} parent=11 // pred_check_branch
          %309 = sbr.rel (%p307) target = $region24
        $region23: #{tpu_custom_call.1} parent=11 // pred_region
          _
        $region24: #{tpu_custom_call.1} parent=11 // pred_fallthru
          _
        // Predicated region
        $region25: #{tpu_custom_call.1} parent=11 // pred_check
          %p310 = pneg %p216
        $region26: #{tpu_custom_call.1} parent=11 // pred_check_branch
          %312 = sbr.rel (%p310) target = $region28
        $region27: #{tpu_custom_call.1} parent=11 // pred_region
          _
        $region28: #{tpu_custom_call.1} parent=11 // pred_fallthru
          _
        // Predicated region
        $region29: #{tpu_custom_call.1} parent=11 // pred_check
          %p313 = pneg %p237
        $region30: #{tpu_custom_call.1} parent=11 // pred_check_branch
          %315 = sbr.rel (%p313) target = $region32
        $region31: #{tpu_custom_call.1} parent=11 // pred_region
          _
        $region32: #{tpu_custom_call.1} parent=11 // pred_fallthru
          _
        // Predicated region
        $region33: #{tpu_custom_call.1} parent=11 // pred_check
          %p316 = pneg %p258
        $region34: #{tpu_custom_call.1} parent=11 // pred_check_branch
          %318 = sbr.rel (%p316) target = $region36
        $region35: #{tpu_custom_call.1} parent=11 // pred_region
          _
        $region36: #{tpu_custom_call.1} parent=11 // pred_fallthru
          _
      $region12: #{tpu_custom_call.1} parent=5 // pred_fallthru
        _
      %p319 = scmp.lt.s32.totalorder %s24, 2
      // Predicated region
      $region37: #{tpu_custom_call.1} parent=5 // pred_check
        %p320 = pneg %p319
      $region38: #{tpu_custom_call.1} parent=5 // pred_check_branch
        %322 = sbr.rel (%p320) target = $region40
      $region39: #{tpu_custom_call.1} parent=5 // pred_region
        // Predicated region
        $region41: #{tpu_custom_call.1} parent=39 // pred_check
          %p323 = pneg %p64
        $region42: #{tpu_custom_call.1} parent=39 // pred_check_branch
          %325 = sbr.rel (%p323) target = $region44
        $region43: #{tpu_custom_call.1} parent=39 // pred_region
          %s326 = ssub.s32 %s32, 1
          %p327 = scmp.gt.s32.totalorder %s326, 0
          %s328 = scalar_select %p327, %s326, 0
          %p329 = scmp.lt.s32.totalorder %s31, 1
          %s330 = scalar_select %p329, %s31, 1
          %p331 = scmp.lt.s32.totalorder %s328, 0
          %s332 = scalar_select %p331, %s328, 0
          %s333 = sadd.s32 %s332, %s330
          %s334 = smul.addr %s333, 8
          %s335 = scalar_lea.vmem %s0, %s334
          %s336 = ssub.s32 %s32, 1
          %p337 = scmp.gt.s32.totalorder %s336, 0
          %s338 = scalar_select %p337, %s336, 0
        $region44: #{tpu_custom_call.1} parent=39 // pred_fallthru
          _
        // Predicated region
        $region45: #{tpu_custom_call.1} parent=39 // pred_check
          %p339 = pneg %p92
        $region46: #{tpu_custom_call.1} parent=39 // pred_check_branch
          %341 = sbr.rel (%p339) target = $region48
        $region47: #{tpu_custom_call.1} parent=39 // pred_region
          %s342 = sand.u32 %s82, 1
          %s343 = scalar_lea.sflag [#allocation3], %s342
          %s344 = sand.u32 %s82, 1
          %s345 = smul.addr %s344, 8
          %s346 = scalar_lea.vmem [#allocation2], %s345
          %s348 = ssub.s32 128, 128
          %349 = vsyncadd %s343, %s348
          %s350 = sadd.s32 %s32, %s31
          %s351 = smul.addr %s350, 128
          %s352 = scalar_lea.hbm %s1, %s351
          %s354 = sshll.u32 %s346, 4
          %s355 = int_to_ptr.vmem [resolvable:$true] %s354
          %357 = dma.hbm_to_vmem [thread:$0]  %s352, 128, %s355, %s343
        $region48: #{tpu_custom_call.1} parent=39 // pred_fallthru
          _
        // Predicated region
        $region49: #{tpu_custom_call.1} parent=39 // pred_check
          %p358 = pneg %p126
        $region50: #{tpu_custom_call.1} parent=39 // pred_check_branch
          %360 = sbr.rel (%p358) target = $region52
        $region51: #{tpu_custom_call.1} parent=39 // pred_region
          %s361 = sand.u32 %s116, 1
          %s362 = scalar_lea.sflag [#allocation6], %s361
          %s363 = sand.u32 %s116, 1
          %s364 = smul.addr %s363, 8
          %s365 = scalar_lea.vmem [#allocation5], %s364
          %s366 = sadd.s32 %s32, 1
          %p367 = scmp.lt.s32.totalorder %s366, 0
          %s368 = scalar_select %p367, %s366, 0
          %s370 = ssub.s32 128, 128
          %371 = vsyncadd %s362, %s370
          %s372 = sadd.s32 %s368, %s31
          %s373 = smul.addr %s372, 128
          %s374 = scalar_lea.hbm %s2, %s373
          %s376 = sshll.u32 %s365, 4
          %s377 = int_to_ptr.vmem [resolvable:$true] %s376
          %379 = dma.hbm_to_vmem [thread:$0]  %s374, 128, %s377, %s362
        $region52: #{tpu_custom_call.1} parent=39 // pred_fallthru
          _
      $region40: #{tpu_custom_call.1} parent=5 // pred_fallthru
        _
      %p380 = scmp.le.s32.totalorder 1, %s24
      %p381 = scmp.lt.s32.totalorder %s24, 3
      %p382 = pnand %p380, %p381
      %p383 = pneg %p382
      // Predicated region
      $region53: #{tpu_custom_call.1} parent=5 // pred_check
        _
      $region54: #{tpu_custom_call.1} parent=5 // pred_check_branch
        %385 = sbr.rel (%p382) target = $region56
      $region55: #{tpu_custom_call.1} parent=5 // pred_region
        %s386 = ssub.s32 %s24, 1
        %s387 = sand.u32 %s85, 1
        %s388 = scalar_lea.sflag [#allocation3], %s387
        %s389 = sand.u32 %s85, 1
        %s390 = smul.addr %s389, 8
        %s391 = scalar_lea.vmem [#allocation2], %s390
        // Predicated region
        $region57: #{tpu_custom_call.1} parent=55 // pred_check
          %p392 = pneg %p98
        $region58: #{tpu_custom_call.1} parent=55 // pred_check_branch
          %394 = sbr.rel (%p392) target = $region60
        $region59: #{tpu_custom_call.1} parent=55 // pred_region
          %395 = dma.done %s388, 128
        $region60: #{tpu_custom_call.1} parent=55 // pred_fallthru
          _
        %s396 = sand.u32 %s119, 1
        %s397 = scalar_lea.sflag [#allocation6], %s396
        %s398 = sand.u32 %s119, 1
        %s399 = smul.addr %s398, 8
        %s400 = scalar_lea.vmem [#allocation5], %s399
        // Predicated region
        $region61: #{tpu_custom_call.1} parent=55 // pred_check
          %p401 = pneg %p132
        $region62: #{tpu_custom_call.1} parent=55 // pred_check_branch
          %403 = sbr.rel (%p401) target = $region64
        $region63: #{tpu_custom_call.1} parent=55 // pred_region
          %404 = dma.done %s397, 128
        $region64: #{tpu_custom_call.1} parent=55 // pred_fallthru
          _
        %s405 = ssub.s32 %s34, 1
        %p406 = scmp.gt.s32.totalorder %s405, 0
        %s407 = scalar_select %p406, %s405, 0
        %p408 = scmp.lt.s32.totalorder %s33, 1
        %s409 = scalar_select %p408, %s33, 1
        %p410 = scmp.lt.s32.totalorder %s407, 0
        %s411 = scalar_select %p410, %s407, 0
        %s412 = sadd.s32 %s411, %s409
        %s413 = smul.addr %s412, 8
        %s414 = scalar_lea.vmem %s0, %s413
        %p415 = pneg %p70
        %p416 = pneg %p67
        %s417 = sand.u32 %s85, 1
        %s418 = scalar_lea.sflag [#allocation3], %s417
        %s419 = sand.u32 %s85, 1
        %s420 = smul.addr %s419, 8
        %s421 = scalar_lea.vmem [#allocation2], %s420
        %p422 = pneg %p98
        %p423 = pneg %p95
        %s424 = sand.u32 %s119, 1
        %s425 = scalar_lea.sflag [#allocation6], %s424
        %s426 = sand.u32 %s119, 1
        %s427 = smul.addr %s426, 8
        %s428 = scalar_lea.vmem [#allocation5], %s427
        %p429 = pneg %p132
        %p430 = pneg %p129
        %p431 = pneg %p153
        %p432 = pneg %p150
        %p433 = pneg %p174
        %p434 = pneg %p171
        %p435 = pneg %p195
        %p436 = pneg %p192
        %p437 = pneg %p216
        %p438 = pneg %p213
        %p439 = pneg %p237
        %p440 = pneg %p234
        %p441 = pneg %p258
        %p442 = pneg %p255
        %p443 = pneg %p286
        %p444 = pneg %p283
        %s445 = sand.u32 %s273, 1
        %s446 = scalar_lea.sflag [#allocation4], %s445
        %s447 = sand.u32 %s273, 1
        %s448 = smul.addr %s447, 8
        %s449 = scalar_lea.vmem [#allocation7], %s448
        %s450 = ssub.s32 %s34, 1
        %p451 = scmp.gt.s32.totalorder %s450, 0
        %s452 = scalar_select %p451, %s450, 0
        %p453 = scmp.lt.s32.totalorder %s33, 1
        %s454 = scalar_select %p453, %s33, 1
        %p455 = scmp.lt.s32.totalorder %s452, 0
        %s456 = scalar_select %p455, %s452, 0
        %s457 = sadd.s32 %s456, %s454
        %s458 = smul.addr %s457, 8
        %s459 = scalar_lea.vmem %s0, %s458
        %s460 = ssub.s32 %s34, 1
        %p461 = scmp.gt.s32.totalorder %s460, 0
        %s462 = scalar_select %p461, %s460, 0
        %s463 = sadd.s32 %s34, 1
        %p464 = scmp.lt.s32.totalorder %s463, 0
        %s465 = scalar_select %p464, %s463, 0
        %v467 = vld [vmem:[%s3] sm:$0x1]
        %v468 = vld [vmem:[%s4] sm:$0x1]
        %s469 = smul.u32 %s34, 8
        %s470 = ssub.s32 %s469, 8
        %v471 = vld [vmem:[%s459] sm:$0xff]
        %vm472 = vcmask 130048
        %v473 = vsel %vm472, %v471, 0.0
        %474 = vadd.xlane.f32.xlu0 %v473
        %v475 = vpop.xlane.xlu0 %474
        %v476 = vrcp.pop 16.0
        %v477 = vmul.f32 %v475, %v476
        %v478 = vsub.f32 %v471, %v477
        %v479 = vmul.f32 %v478, %v478
        %v480 = vsel %vm472, %v479, 0.0
        %481 = vadd.xlane.f32.xlu0 %v480
        %v482 = vpop.xlane.xlu0 %481
        %v483 = vmul.f32 %v482, %v476
        %v484 = vadd.f32 %v483, 1e-05
        %v485 = vrsqrt.pop %v484
        %v486 = vmul.f32 %v478, %v485
        %v488 = vlaneseq
        %v489 = vshrl.u32 %v488, 7
        %v490 = vsub.s32 0, %v489
        %v491 = vrot.slane %v467, %v490
        %v493 = vmul.f32 %v486, %v491
        %v495 = vlaneseq
        %v496 = vshrl.u32 %v495, 7
        %v497 = vsub.s32 0, %v496
        %v498 = vrot.slane %v468, %v497
        %v500 = vadd.f32 %v493, %v498
        %v501 = vlaneseq
        %v502 = vshrl.u32 %v501, 7
        %v503 = vstv %s470
        %v504 = vadd.s32 %v503, %v502
        %vm505 = vcmp.ge.s32.totalorder %v504, 0
        %vm506 = vcmp.lt.s32.totalorder %v504, 8
        %vm507 = vmand %vm505, %vm506
        %v508 = vsel %vm507, 1, 0
        %vm509 = vcmp.eq.s32.totalorder %v508, 1
        %v510 = vsel %vm509, %v500, 0.0
        %v511 = vld [vmem:[%s391] sm:$0xff]
        %v512 = vsel %vm472, %v511, 0.0
        %513 = vadd.xlane.f32.xlu0 %v512
        %v514 = vpop.xlane.xlu0 %513
        %v515 = vmul.f32 %v514, %v476
        %v516 = vsub.f32 %v511, %v515
        %v517 = vmul.f32 %v516, %v516
        %v518 = vsel %vm472, %v517, 0.0
        %519 = vadd.xlane.f32.xlu0 %v518
        %v520 = vpop.xlane.xlu0 %519
        %v521 = vmul.f32 %v520, %v476
        %v522 = vadd.f32 %v521, 1e-05
        %v523 = vrsqrt.pop %v522
        %v524 = vmul.f32 %v516, %v523
        %v525 = vmul.f32 %v524, %v491
        %v526 = vadd.f32 %v525, %v498
        %v527 = vstv %s469
        %v528 = vadd.s32 %v527, %v502
        %vm529 = vcmp.ge.s32.totalorder %v528, 0
        %vm530 = vcmp.lt.s32.totalorder %v528, 8
        %vm531 = vmand %vm529, %vm530
        %v532 = vsel %vm531, 1, 0
        %vm533 = vcmp.eq.s32.totalorder %v532, 1
        %v534 = vsel %vm533, %v526, 0.0
        %s535 = sadd.s32 %s34, 1
        %s536 = smul.u32 %s535, 8
        %v537 = vld [vmem:[%s400] sm:$0xff]
        %v538 = vsel %vm472, %v537, 0.0
        %539 = vadd.xlane.f32.xlu0 %v538
        %v540 = vpop.xlane.xlu0 %539
        %v541 = vmul.f32 %v540, %v476
        %v542 = vsub.f32 %v537, %v541
        %v543 = vmul.f32 %v542, %v542
        %v544 = vsel %vm472, %v543, 0.0
        %545 = vadd.xlane.f32.xlu0 %v544
        %v546 = vpop.xlane.xlu0 %545
        %v547 = vmul.f32 %v546, %v476
        %v548 = vadd.f32 %v547, 1e-05
        %v549 = vrsqrt.pop %v548
        %v550 = vmul.f32 %v542, %v549
        %v551 = vmul.f32 %v550, %v491
        %v552 = vadd.f32 %v551, %v498
        %v553 = vstv %s536
        %v554 = vadd.s32 %v553, %v502
        %vm555 = vcmp.ge.s32.totalorder %v554, 0
        %vm556 = vcmp.lt.s32.totalorder %v554, 8
        %vm557 = vmand %vm555, %vm556
        %v558 = vsel %vm557, 1, 0
        %vm559 = vcmp.eq.s32.totalorder %v558, 1
        %v560 = vsel %vm559, %v552, 0.0
        %v561 = vrot.slane %v510, 7
        %v562 = vrot.slane %v534, 7
        %vm563 = vcmp.lt.s32.totalorder %v502, 1
        %v564 = vsel %vm563, %v561, %v562
        %v565 = vpack.c.bf16 %v564, %v564
        %v566 = vld [vmem:[%s5] sm:$0xf]
        %v567 = vld [vmem:[%s5 + $0x4] sm:$0xf]
        %v568 = vpack.c.bf16 %v534, %v534
        %s569 = scalar_lea.vmem %s5, 8
        %v570 = vld [vmem:[%s569] sm:$0xf]
        %v571 = vld [vmem:[%s569 + $0x4] sm:$0xf]
        %v574 = vunpack.c.l.b16 %v570
        %v575 = vunpack.c.l.b16 %v571
        %v576 = vpack.c.b16 %v575, %v574
        %v579 = vsel %vm472, %v568, 0
        %581 = vmatprep.subr.bf16.mxu0 0
        %582 = vmatpush1.bf16.msra.mxu0 %v576
        %583 = vmatprep.subr.bf16.mxu0 0
        %584 = vmatpush1.bf16.msra.mxu0 0
        %585 = vmatprep.subr.bf16.mxu0 0
        %586 = vmatpush1.bf16.msra.mxu0 0
        %587 = vmatprep.subr.bf16.mxu0 0
        %588 = vmatpush1.bf16.msra.mxu0 0
        %589 = vmatprep.subr.bf16.mxu0 0
        %590 = vmatpush1.bf16.msra.mxu0 0
        %591 = vmatprep.subr.bf16.mxu0 0
        %592 = vmatpush1.bf16.msra.mxu0 0
        %593 = vmatprep.subr.bf16.mxu0 0
        %594 = vmatpush1.bf16.msra.mxu0 0
        %595 = vmatprep.subr.bf16.mxu0 0
        %596 = vmatpush1.bf16.msra.mxu0 0
        %597 = vmatprep.subr.bf16.mxu0 0
        %598 = vmatpush1.bf16.msra.mxu0 0
        %599 = vmatprep.subr.bf16.mxu0 0
        %600 = vmatpush1.bf16.msra.mxu0 0
        %601 = vmatprep.subr.bf16.mxu0 0
        %602 = vmatpush1.bf16.msra.mxu0 0
        %603 = vmatprep.subr.bf16.mxu0 0
        %604 = vmatpush1.bf16.msra.mxu0 0
        %605 = vmatprep.subr.bf16.mxu0 0
        %606 = vmatpush1.bf16.msra.mxu0 0
        %607 = vmatprep.subr.bf16.mxu0 0
        %608 = vmatpush1.bf16.msra.mxu0 0
        %609 = vmatprep.subr.bf16.mxu0 0
        %610 = vmatpush1.bf16.msra.mxu0 0
        %611 = vmatprep.subr.bf16.mxu0 0
        %612 = vmatpush1.bf16.msra.mxu0 0
        %613 = vmatprep.mubr.bf16.mxu0 0
        %614 = vmatmul.mubr.bf16.gmra.mrb[0].mxu0 %v579
        %v615 = vpop.f32.mrb[0].mxu0
        %v616 = vadd.f32 0.0, %v615
        %v617 = vpop.f32.mrb[0].mxu0
        %v618 = vpop.f32.mrb[0].mxu0
        %v619 = vpop.f32.mrb[0].mxu0
        %620 = vdwg.mxu0
        %v623 = vunpack.c.l.b16 %v566
        %v624 = vunpack.c.l.b16 %v567
        %v625 = vpack.c.b16 %v624, %v623
        %v628 = vsel %vm472, %v565, 0
        %630 = vmatprep.subr.bf16.mxu0 0
        %631 = vmatpush1.bf16.msra.mxu0 %v625
        %632 = vmatprep.subr.bf16.mxu0 0
        %633 = vmatpush1.bf16.msra.mxu0 0
        %634 = vmatprep.subr.bf16.mxu0 0
        %635 = vmatpush1.bf16.msra.mxu0 0
        %636 = vmatprep.subr.bf16.mxu0 0
        %637 = vmatpush1.bf16.msra.mxu0 0
        %638 = vmatprep.subr.bf16.mxu0 0
        %639 = vmatpush1.bf16.msra.mxu0 0
        %640 = vmatprep.subr.bf16.mxu0 0
        %641 = vmatpush1.bf16.msra.mxu0 0
        %642 = vmatprep.subr.bf16.mxu0 0
        %643 = vmatpush1.bf16.msra.mxu0 0
        %644 = vmatprep.subr.bf16.mxu0 0
        %645 = vmatpush1.bf16.msra.mxu0 0
        %646 = vmatprep.subr.bf16.mxu0 0
        %647 = vmatpush1.bf16.msra.mxu0 0
        %648 = vmatprep.subr.bf16.mxu0 0
        %649 = vmatpush1.bf16.msra.mxu0 0
        %650 = vmatprep.subr.bf16.mxu0 0
        %651 = vmatpush1.bf16.msra.mxu0 0
        %652 = vmatprep.subr.bf16.mxu0 0
        %653 = vmatpush1.bf16.msra.mxu0 0
        %654 = vmatprep.subr.bf16.mxu0 0
        %655 = vmatpush1.bf16.msra.mxu0 0
        %656 = vmatprep.subr.bf16.mxu0 0
        %657 = vmatpush1.bf16.msra.mxu0 0
        %658 = vmatprep.subr.bf16.mxu0 0
        %659 = vmatpush1.bf16.msra.mxu0 0
        %660 = vmatprep.subr.bf16.mxu0 0
        %661 = vmatpush1.bf16.msra.mxu0 0
        %662 = vmatprep.mubr.bf16.mxu0 0
        %663 = vmatmul.mubr.bf16.gmra.mrb[0].mxu0 %v628
        %v664 = vpop.f32.mrb[0].mxu0
        %v665 = vadd.f32 %v616, %v664
        %v666 = vpop.f32.mrb[0].mxu0
        %v667 = vpop.f32.mrb[0].mxu0
        %v668 = vpop.f32.mrb[0].mxu0
        %669 = vdwg.mxu0
        %v670 = vrot.slane %v534, 1
        %v671 = vrot.slane %v560, 1
        %vm672 = vcmp.lt.s32.totalorder %v502, 7
        %v673 = vsel %vm672, %v670, %v671
        %v674 = vpack.c.bf16 %v673, %v673
        %s675 = scalar_lea.vmem %s5, 16
        %v676 = vld [vmem:[%s675] sm:$0xf]
        %v677 = vld [vmem:[%s675 + $0x4] sm:$0xf]
        %v680 = vunpack.c.l.b16 %v676
        %v681 = vunpack.c.l.b16 %v677
        %v682 = vpack.c.b16 %v681, %v680
        %v685 = vsel %vm472, %v674, 0
        %687 = vmatprep.subr.bf16.mxu0 0
        %688 = vmatpush1.bf16.msra.mxu0 %v682
        %689 = vmatprep.subr.bf16.mxu0 0
        %690 = vmatpush1.bf16.msra.mxu0 0
        %691 = vmatprep.subr.bf16.mxu0 0
        %692 = vmatpush1.bf16.msra.mxu0 0
        %693 = vmatprep.subr.bf16.mxu0 0
        %694 = vmatpush1.bf16.msra.mxu0 0
        %695 = vmatprep.subr.bf16.mxu0 0
        %696 = vmatpush1.bf16.msra.mxu0 0
        %697 = vmatprep.subr.bf16.mxu0 0
        %698 = vmatpush1.bf16.msra.mxu0 0
        %699 = vmatprep.subr.bf16.mxu0 0
        %700 = vmatpush1.bf16.msra.mxu0 0
        %701 = vmatprep.subr.bf16.mxu0 0
        %702 = vmatpush1.bf16.msra.mxu0 0
        %703 = vmatprep.subr.bf16.mxu0 0
        %704 = vmatpush1.bf16.msra.mxu0 0
        %705 = vmatprep.subr.bf16.mxu0 0
        %706 = vmatpush1.bf16.msra.mxu0 0
        %707 = vmatprep.subr.bf16.mxu0 0
        %708 = vmatpush1.bf16.msra.mxu0 0
        %709 = vmatprep.subr.bf16.mxu0 0
        %710 = vmatpush1.bf16.msra.mxu0 0
        %711 = vmatprep.subr.bf16.mxu0 0
        %712 = vmatpush1.bf16.msra.mxu0 0
        %713 = vmatprep.subr.bf16.mxu0 0
        %714 = vmatpush1.bf16.msra.mxu0 0
        %715 = vmatprep.subr.bf16.mxu0 0
        %716 = vmatpush1.bf16.msra.mxu0 0
        %717 = vmatprep.subr.bf16.mxu0 0
        %718 = vmatpush1.bf16.msra.mxu0 0
        %719 = vmatprep.mubr.bf16.mxu0 0
        %720 = vmatmul.mubr.bf16.gmra.mrb[0].mxu0 %v685
        %v721 = vpop.f32.mrb[0].mxu0
        %v722 = vadd.f32 0.0, %v721
        %v723 = vpop.f32.mrb[0].mxu0
        %v724 = vpop.f32.mrb[0].mxu0
        %v725 = vpop.f32.mrb[0].mxu0
        %726 = vdwg.mxu0
        %v727 = vadd.f32 %v665, %v722
        %v728 = vld [vmem:[%s6] sm:$0x1]
        %v730 = vlaneseq
        %v731 = vshrl.u32 %v730, 7
        %v732 = vsub.s32 0, %v731
        %v733 = vrot.slane %v728, %v732
        %v735 = vadd.f32 %v727, %v733
        %vm736 = vcmp.ge.f32.partialorder %v735, 0.0
        %v737 = vmul.f32 %v735, 0.3
        %v738 = vsel %vm736, %v735, %v737
        %v739 = vpack.c.bf16 %v738, %v738
        %v740 = vld [vmem:[%s7] sm:$0xf]
        %v741 = vld [vmem:[%s7 + $0x4] sm:$0xf]
        %v742 = vld [vmem:[%s7 + $0x8] sm:$0xf]
        %v743 = vld [vmem:[%s7 + $0xc] sm:$0xf]
        %v744 = vld [vmem:[%s7 + $0x10] sm:$0xf]
        %v745 = vld [vmem:[%s7 + $0x14] sm:$0xf]
        %v746 = vld [vmem:[%s7 + $0x18] sm:$0xf]
        %v747 = vld [vmem:[%s7 + $0x1c] sm:$0xf]
        %v748 = vld [vmem:[%s8] sm:$0x1]
        %v750 = vlaneseq
        %v751 = vshrl.u32 %v750, 7
        %v752 = vsub.s32 0, %v751
        %v753 = vrot.slane %v748, %v752
        %v763 = vunpack.c.l.b16 %v740
        %v764 = vunpack.c.l.b16 %v741
        %v765 = vunpack.c.l.b16 %v742
        %v766 = vunpack.c.l.b16 %v743
        %v767 = vunpack.c.l.b16 %v744
        %v768 = vunpack.c.l.b16 %v745
        %v769 = vunpack.c.l.b16 %v746
        %v770 = vunpack.c.l.b16 %v747
        %v771 = vpack.c.b16 %v764, %v763
        %v772 = vpack.c.b16 %v766, %v765
        %v773 = vpack.c.b16 %v768, %v767
        %v774 = vpack.c.b16 %v770, %v769
        %vm779 = vcmask 523264
        %v781 = vsel %vm779, %v739, 0
        %783 = vmatprep.subr.bf16.mxu0 0
        %784 = vmatpush1.bf16.msra.mxu0 %v771
        %785 = vmatprep.subr.bf16.mxu0 0
        %786 = vmatpush1.bf16.msra.mxu0 %v772
        %787 = vmatprep.subr.bf16.mxu0 0
        %788 = vmatpush1.bf16.msra.mxu0 %v773
        %789 = vmatprep.subr.bf16.mxu0 0
        %790 = vmatpush1.bf16.msra.mxu0 %v774
        %791 = vmatprep.subr.bf16.mxu0 0
        %792 = vmatpush1.bf16.msra.mxu0 0
        %793 = vmatprep.subr.bf16.mxu0 0
        %794 = vmatpush1.bf16.msra.mxu0 0
        %795 = vmatprep.subr.bf16.mxu0 0
        %796 = vmatpush1.bf16.msra.mxu0 0
        %797 = vmatprep.subr.bf16.mxu0 0
        %798 = vmatpush1.bf16.msra.mxu0 0
        %799 = vmatprep.subr.bf16.mxu0 0
        %800 = vmatpush1.bf16.msra.mxu0 0
        %801 = vmatprep.subr.bf16.mxu0 0
        %802 = vmatpush1.bf16.msra.mxu0 0
        %803 = vmatprep.subr.bf16.mxu0 0
        %804 = vmatpush1.bf16.msra.mxu0 0
        %805 = vmatprep.subr.bf16.mxu0 0
        %806 = vmatpush1.bf16.msra.mxu0 0
        %807 = vmatprep.subr.bf16.mxu0 0
        %808 = vmatpush1.bf16.msra.mxu0 0
        %809 = vmatprep.subr.bf16.mxu0 0
        %810 = vmatpush1.bf16.msra.mxu0 0
        %811 = vmatprep.subr.bf16.mxu0 0
        %812 = vmatpush1.bf16.msra.mxu0 0
        %813 = vmatprep.subr.bf16.mxu0 0
        %814 = vmatpush1.bf16.msra.mxu0 0
        %815 = vmatprep.mubr.bf16.mxu0 0
        %816 = vmatmul.mubr.bf16.gmra.mrb[0].mxu0 %v781
        %v817 = vpop.f32.mrb[0].mxu0
        %v818 = vadd.f32 %v753, %v817
        %v819 = vpop.f32.mrb[0].mxu0
        %v820 = vpop.f32.mrb[0].mxu0
        %v821 = vpop.f32.mrb[0].mxu0
        %822 = vdwg.mxu0
        %v823 = vmul.f32 %v818, 0.5
        %824 = vst.msk [vmem:[%s449] sm:$0xff] %vm472, %v823
        %s825 = sand.u32 %s273, 1
        %s826 = scalar_lea.sflag [#allocation4], %s825
        %s827 = sand.u32 %s273, 1
        %s828 = smul.addr %s827, 8
        %s829 = scalar_lea.vmem [#allocation7], %s828
        // Predicated region
        $region65: #{tpu_custom_call.1} parent=55 // pred_check
          %p830 = pneg %p283
        $region66: #{tpu_custom_call.1} parent=55 // pred_check_branch
          %832 = sbr.rel (%p830) target = $region68
        $region67: #{tpu_custom_call.1} parent=55 // pred_region
          %s834 = ssub.s32 128, 128
          %835 = vsyncadd %s826, %s834
          %s836 = sadd.s32 %s34, %s33
          %s837 = smul.addr %s836, 128
          %s838 = scalar_lea.hbm %s9, %s837
          %s840 = sshll.u32 %s829, 4
          %s841 = int_to_ptr.vmem [resolvable:$true] %s840
          %843 = dma.vmem_to_hbm [thread:$0]  %s841, 128, %s838, %s826
        $region68: #{tpu_custom_call.1} parent=55 // pred_fallthru
          _
      $region56: #{tpu_custom_call.1} parent=5 // pred_fallthru
        _
      %p844 = scmp.le.s32.totalorder 2, %s24
      // Predicated region
      $region69: #{tpu_custom_call.1} parent=5 // pred_check
        %p845 = pneg %p844
      $region70: #{tpu_custom_call.1} parent=5 // pred_check_branch
        %847 = sbr.rel (%p845) target = $region72
      $region71: #{tpu_custom_call.1} parent=5 // pred_region
        %s848 = ssub.s32 %s24, 2
        // Predicated region
        $region73: #{tpu_custom_call.1} parent=71 // pred_check
          %p849 = pneg %p289
        $region74: #{tpu_custom_call.1} parent=71 // pred_check_branch
          %851 = sbr.rel (%p849) target = $region76
        $region75: #{tpu_custom_call.1} parent=71 // pred_region
          %s852 = sand.u32 %s274, 1
          %s853 = scalar_lea.sflag [#allocation4], %s852
          %s854 = sand.u32 %s274, 1
          %s855 = smul.addr %s854, 8
          %s856 = scalar_lea.vmem [#allocation7], %s855
          %857 = dma.done %s853, 128
        $region76: #{tpu_custom_call.1} parent=71 // pred_fallthru
          _
      $region72: #{tpu_custom_call.1} parent=5 // pred_fallthru
        _
    $region6: #{tpu_custom_call.1} parent=1 // loop_footer
      %s28 = sadd.s32 1, %s24
    $region7: #{tpu_custom_call.1} parent=1 // loop_footer_branch
      %23 = sbr.rel target = $region3
    $region8: #{tpu_custom_call.1} parent=1 // loop_exit
      _
    %858 = vsyncpa [#allocation3], 1
    %s859 = scalar_lea.sflag [#allocation3], 1
    %860 = vsyncpa %s859, 1
    %861 = vsyncpa [#allocation6], 1
    %s862 = scalar_lea.sflag [#allocation6], 1
    %863 = vsyncpa %s862, 1
    %864 = vsyncpa [#allocation4], 1
    %s865 = scalar_lea.sflag [#allocation4], 1
    %866 = vsyncpa %s865, 1

</llo_original>
